<compile_context>
chip_gen: v5e
topology: v5e:2x2
jax: 0.10.0
libtpu: 0.0.40
codegen_flags: <defaults>
</compile_context>

<pallas_src>
import jax
import jax.numpy as jnp
from jax import lax
from jax.experimental import pallas as pl
from jax.experimental.pallas import tpu as pltpu
import numpy as np


def _rnn_bel_kernel(x_ref, h0_ref, wih_t_ref, whh_t_ref, b_ref, wl_t_ref, bl_ref,
                    out_bel_ref, out_h_ref, xpad_ref, hpad_ref):
    """Whole-sequence RNN + linear head, single invocation, batch-first outputs.

    x_ref:     (B,  T*I)  batch-first flattened input (row b, lanes t*I..t*I+I)
    h0_ref:    (B,  H)    initial hidden state
    wih_t_ref: (I,  H)    W_ih^T   (pre-transposed at init)
    whh_t_ref: (H,  H)    W_hh^T   (pre-transposed at init)
    b_ref:     (1,  H)    b_ih + b_hh (folded at init)
    wl_t_ref:  (H,  O)    W_lin^T  (pre-transposed at init)
    bl_ref:    (1,  O)    b_lin
    out_bel_ref: (BP, T*O)  batch-first head-output slab (rows >= B are padding)
    out_h_ref:   (BP, T*H)  batch-first hidden-state slab (rows >= B are padding)
    xpad_ref:  (BP, T*I)  VMEM scratch: x padded to a full sublane group
    hpad_ref:  (BP, H)    VMEM scratch: h0 padded to a full sublane group
    """
    B = h0_ref.shape[0]
    BP, H = hpad_ref.shape                      # padded batch rows (multiple of 8)
    I = wih_t_ref.shape[0]
    O = wl_t_ref.shape[1]
    T = x_ref.shape[1] // I

    # --- Pad the batch dimension to a full sublane group, once. ---------------
    # Zero padding keeps padded rows deterministic; they never mix into real rows
    # (matmuls with the weight on the right are row-wise independent) and the
    # wrapper slices them off.
    xpad_ref[...] = jnp.zeros_like(xpad_ref)
    xpad_ref[0:B, :] = x_ref[...]
    hpad_ref[...] = jnp.zeros_like(hpad_ref)
    hpad_ref[0:B, :] = h0_ref[...]

    # --- Hoist loop-invariant loads / broadcasts out of the unrolled loop. ----
    wih = wih_t_ref[...]                                    # (I, H)
    whh = whh_t_ref[...]                                    # (H, H)
    wl = wl_t_ref[...]                                      # (H, O)
    bvec = jnp.broadcast_to(b_ref[...], (BP, H))            # broadcast once, not T times
    blv = jnp.broadcast_to(bl_ref[...], (BP, O))

    # --- Serial recurrence, fully unrolled (T is small & static). -------------
    h = hpad_ref[...]                                       # (BP, H)
    for t in range(T):
        x_t = xpad_ref[:, t * I:(t + 1) * I]                # (BP, I) aligned vld
        # Input projection + recurrent matmul + tanh.  Only the h @ W_hh^T term is
        # on the serial critical path; the x_t projection and the head matmul below
        # are independent filler that overlaps with it.
        h = jnp.tanh(
            jnp.dot(x_t, wih, preferred_element_type=jnp.float32)
            + jnp.dot(h, whh, preferred_element_type=jnp.float32)
            + bvec
        )
        # Unmasked, sublane-aligned (BP, H) store straight into the batch-first slab.
        out_h_ref[:, t * H:(t + 1) * H] = h
        # Linear head for this step (off the dependence chain).
        out_bel_ref[:, t * O:(t + 1) * O] = (
            jnp.dot(h, wl, preferred_element_type=jnp.float32) + blv
        )


def make_rnn_bel_params(w_ih, w_hh, b_ih, b_hh, w_lin, b_lin):
    """One-time parameter preparation (module init) — off the per-call path."""
    H = w_ih.shape[0]
    O = w_lin.shape[0]
    params = (
        jnp.asarray(w_ih, jnp.float32).T,                                   # (I, H)
        jnp.asarray(w_hh, jnp.float32).T,                                   # (H, H)
        (jnp.asarray(b_ih, jnp.float32)
         + jnp.asarray(b_hh, jnp.float32)).reshape(1, H),                   # (1, H)
        jnp.asarray(w_lin, jnp.float32).T,                                  # (H, O)
        jnp.asarray(b_lin, jnp.float32).reshape(1, O),                      # (1, O)
    )
    return jax.block_until_ready(params)


@jax.jit
def rnn_bel_forward(x, h0, wih_t, whh_t, b, wl_t, bl):
    """Jitted Pallas implementation of rnn_bel.forward.

    x:  (B, T, I) float32, batch_first.   h0: (num_layers=1, B, H) float32.
    Weights are the pre-transposed/folded params from make_rnn_bel_params.
    Returns (out_bel (B, T, O), out (B, T, H)).
    """
    B, T, I = x.shape
    H = wih_t.shape[1]
    O = wl_t.shape[1]
    BP = ((B + 7) // 8) * 8                 # pad batch rows to a full f32 sublane group

    # Contiguity-preserving reshape only — no transpose, no data movement.
    x2 = x.reshape(B, T * I).astype(jnp.float32)
    h0_2d = h0[0].astype(jnp.float32)

    vmem = pl.BlockSpec(memory_space=pltpu.MemorySpace.VMEM)

    flops = 2 * T * BP * H * (I + H + O)
    bytes_accessed = 4 * (B * T * I + B * H + I * H + H * H + H + H * O + O
                          + BP * T * (H + O))

    out_bel_slab, out_h_slab = pl.pallas_call(
        _rnn_bel_kernel,
        out_shape=(
            jax.ShapeDtypeStruct((BP, T * O), jnp.float32),   # batch-first out_bel slab
            jax.ShapeDtypeStruct((BP, T * H), jnp.float32),   # batch-first hidden slab
        ),
        in_specs=[vmem] * 7,
        out_specs=(vmem, vmem),
        scratch_shapes=[
            pltpu.VMEM((BP, T * I), jnp.float32),             # padded x
            pltpu.VMEM((BP, H), jnp.float32),                 # padded h0
        ],
        cost_estimate=pl.CostEstimate(
            flops=flops,
            transcendentals=T * BP * H,
            bytes_accessed=bytes_accessed,
        ),
    )(x2, h0_2d, wih_t, whh_t, b, wl_t, bl)

    # Drop padded rows; reshapes preserve contiguity (free / fused under jit).
    out = out_h_slab[:B].reshape(B, T, H)
    out_bel = out_bel_slab[:B].reshape(B, T, O)
    return out_bel, out


def rnn_bel_reference(x, h0, w_ih, w_hh, b_ih, b_hh, w_lin, b_lin):
    """Pure-JAX reference (matches torch.nn.RNN tanh + Linear)."""
    def step(h, x_t):
        h_new = jnp.tanh(x_t @ w_ih.T + b_ih + h @ w_hh.T + b_hh)
        return h_new, h_new

    x_tm = jnp.transpose(x, (1, 0, 2))          # (T, B, I)
    _, hs = lax.scan(step, h0[0], x_tm)         # (T, B, H)
    out = jnp.transpose(hs, (1, 0, 2))          # (B, T, H)
    out_bel = out @ w_lin.T + b_lin             # (B, T, O)
    return out_bel, out


if __name__ == "__main__":
    # Small shapes consistent with the module's forward:
    B, T = 2, 8                  # batch, sequence length
    input_size = 4
    hidden_size_bel = 32
    output_size_bel = 3
    num_layers = 1               # nn.RNN constructed with default num_layers=1

    key = jax.random.PRNGKey(0)
    k_x, k_wih, k_whh, k_bih, k_bhh, k_wl, k_bl = jax.random.split(key, 7)

    # Deterministic parameter init (mimics PyTorch uniform(-1/sqrt(H), 1/sqrt(H)))
    kr = 1.0 / np.sqrt(hidden_size_bel)
    kl = 1.0 / np.sqrt(hidden_size_bel)
    w_ih = jax.random.uniform(k_wih, (hidden_size_bel, input_size), jnp.float32, -kr, kr)
    w_hh = jax.random.uniform(k_whh, (hidden_size_bel, hidden_size_bel), jnp.float32, -kr, kr)
    b_ih = jax.random.uniform(k_bih, (hidden_size_bel,), jnp.float32, -kr, kr)
    b_hh = jax.random.uniform(k_bhh, (hidden_size_bel,), jnp.float32, -kr, kr)
    w_lin = jax.random.uniform(k_wl, (output_size_bel, hidden_size_bel), jnp.float32, -kl, kl)
    b_lin = jax.random.uniform(k_bl, (output_size_bel,), jnp.float32, -kl, kl)

    x = jax.random.normal(k_x, (B, T, input_size), jnp.float32)
    # h_0 defaults to zeros in the PyTorch forward
    h0 = jnp.zeros((num_layers, B, hidden_size_bel), jnp.float32)

    # One-time init: pre-transposed weights + folded bias (off the per-call path).
    params = make_rnn_bel_params(w_ih, w_hh, b_ih, b_hh, w_lin, b_lin)

    out_bel, out = rnn_bel_forward(x, h0, *params)
    jax.block_until_ready((out_bel, out))

    # Correctness check against pure-JAX reference
    ref_bel, ref_out = rnn_bel_reference(x, h0, w_ih, w_hh, b_ih, b_hh, w_lin, b_lin)
    np.testing.assert_allclose(np.asarray(out), np.asarray(ref_out), rtol=1e-5, atol=1e-5)
    np.testing.assert_allclose(np.asarray(out_bel), np.asarray(ref_bel), rtol=1e-5, atol=1e-5)

    assert out_bel.shape == (B, T, output_size_bel)
    assert out.shape == (B, T, hidden_size_bel)

    print("KERNEL_OK")
</pallas_src>

<mosaic_0001>
module attributes {stable_mosaic.version = 11 : i64} {
  func.func @_rnn_bel_kernel(%arg0: memref<2x32xf32, #tpu.memory_space<vmem>>, %arg1: memref<2x32xf32, #tpu.memory_space<vmem>>, %arg2: memref<4x32xf32, #tpu.memory_space<vmem>>, %arg3: memref<32x32xf32, #tpu.memory_space<vmem>>, %arg4: memref<1x32xf32, #tpu.memory_space<vmem>>, %arg5: memref<32x3xf32, #tpu.memory_space<vmem>>, %arg6: memref<1x3xf32, #tpu.memory_space<vmem>>, %arg7: memref<8x24xf32, #tpu.memory_space<vmem>>, %arg8: memref<8x256xf32, #tpu.memory_space<vmem>>, %arg9: memref<8x32xf32, #tpu.memory_space<vmem>>, %arg10: memref<8x32xf32, #tpu.memory_space<vmem>>) attributes {dimension_semantics = [], scalar_prefetch = 0 : i64, scratch_operands = 2 : i64, tpu.core_type = #tpu.core_type<tc>} {
    %cst = arith.constant 0.000000e+00 : f32
    %0 = vector.broadcast %cst : f32 to vector<8x32xf32>
    %c0 = arith.constant 0 : index
    %c0_0 = arith.constant 0 : index
    %1 = vector.load %arg9[%c0, %c0_0] : memref<8x32xf32, #tpu.memory_space<vmem>>, vector<8x32xf32>
    tpu.vector_store %arg9[%c0, %c0_0], %0 {strides = array<i32>} : memref<8x32xf32, #tpu.memory_space<vmem>>, vector<8x32xf32>,
    %c0_1 = arith.constant 0 : index
    %c0_2 = arith.constant 0 : index
    %2 = vector.load %arg0[%c0_1, %c0_2] : memref<2x32xf32, #tpu.memory_space<vmem>>, vector<2x32xf32>
    %c0_3 = arith.constant 0 : index
    %c0_4 = arith.constant 0 : index
    %3 = vector.load %arg9[%c0_3, %c0_4] : memref<8x32xf32, #tpu.memory_space<vmem>>, vector<2x32xf32>
    tpu.vector_store %arg9[%c0_3, %c0_4], %2 {strides = array<i32>} : memref<8x32xf32, #tpu.memory_space<vmem>>, vector<2x32xf32>,
    %cst_5 = arith.constant 0.000000e+00 : f32
    %4 = vector.broadcast %cst_5 : f32 to vector<8x32xf32>
    %c0_6 = arith.constant 0 : index
    %c0_7 = arith.constant 0 : index
    %5 = vector.load %arg10[%c0_6, %c0_7] : memref<8x32xf32, #tpu.memory_space<vmem>>, vector<8x32xf32>
    tpu.vector_store %arg10[%c0_6, %c0_7], %4 {strides = array<i32>} : memref<8x32xf32, #tpu.memory_space<vmem>>, vector<8x32xf32>,
    %c0_8 = arith.constant 0 : index
    %c0_9 = arith.constant 0 : index
    %6 = vector.load %arg1[%c0_8, %c0_9] : memref<2x32xf32, #tpu.memory_space<vmem>>, vector<2x32xf32>
    %c0_10 = arith.constant 0 : index
    %c0_11 = arith.constant 0 : index
    %7 = vector.load %arg10[%c0_10, %c0_11] : memref<8x32xf32, #tpu.memory_space<vmem>>, vector<2x32xf32>
    tpu.vector_store %arg10[%c0_10, %c0_11], %6 {strides = array<i32>} : memref<8x32xf32, #tpu.memory_space<vmem>>, vector<2x32xf32>,
    %c0_12 = arith.constant 0 : index
    %c0_13 = arith.constant 0 : index
    %8 = vector.load %arg2[%c0_12, %c0_13] : memref<4x32xf32, #tpu.memory_space<vmem>>, vector<4x32xf32>
    %c0_14 = arith.constant 0 : index
    %c0_15 = arith.constant 0 : index
    %9 = vector.load %arg3[%c0_14, %c0_15] : memref<32x32xf32, #tpu.memory_space<vmem>>, vector<32x32xf32>
    %c0_16 = arith.constant 0 : index
    %c0_17 = arith.constant 0 : index
    %10 = vector.load %arg5[%c0_16, %c0_17] : memref<32x3xf32, #tpu.memory_space<vmem>>, vector<32x3xf32>
    %c0_18 = arith.constant 0 : index
    %c0_19 = arith.constant 0 : index
    %11 = vector.load %arg4[%c0_18, %c0_19] : memref<1x32xf32, #tpu.memory_space<vmem>>, vector<1x32xf32>
    %12 = vector.shape_cast %11 : vector<1x32xf32> to vector<1x32xf32>
    %13 = vector.broadcast %12 : vector<1x32xf32> to vector<8x32xf32>
    %c0_20 = arith.constant 0 : index
    %c0_21 = arith.constant 0 : index
    %14 = vector.load %arg6[%c0_20, %c0_21] : memref<1x3xf32, #tpu.memory_space<vmem>>, vector<1x3xf32>
    %15 = vector.shape_cast %14 : vector<1x3xf32> to vector<1x3xf32>
    %16 = vector.broadcast %15 : vector<1x3xf32> to vector<8x3xf32>
    %c0_22 = arith.constant 0 : index
    %c0_23 = arith.constant 0 : index
    %17 = vector.load %arg10[%c0_22, %c0_23] : memref<8x32xf32, #tpu.memory_space<vmem>>, vector<8x32xf32>
    %c0_24 = arith.constant 0 : index
    %c0_25 = arith.constant 0 : index
    %18 = vector.load %arg9[%c0_24, %c0_25] : memref<8x32xf32, #tpu.memory_space<vmem>>, vector<8x4xf32>
    %cst_26 = arith.constant dense<0.000000e+00> : vector<8x32xf32>
    %19 = tpu.matmul %18, %8, %cst_26 {dimension_numbers = #tpu.dot_dimension_numbers<[1], [0], [0], [1], [0, 0, 1, 1], [], []>} : vector<8x4xf32>, vector<4x32xf32>, vector<8x32xf32> -> vector<8x32xf32>
    %cst_27 = arith.constant dense<0.000000e+00> : vector<8x32xf32>
    %20 = tpu.matmul %17, %9, %cst_27 {dimension_numbers = #tpu.dot_dimension_numbers<[1], [0], [0], [1], [0, 0, 1, 1], [], []>} : vector<8x32xf32>, vector<32x32xf32>, vector<8x32xf32> -> vector<8x32xf32>
    %21 = arith.addf %19, %20 : vector<8x32xf32>
    %22 = arith.addf %21, %13 : vector<8x32xf32>
    %23 = math.tanh %22 : vector<8x32xf32>
    %c0_28 = arith.constant 0 : index
    %c0_29 = arith.constant 0 : index
    %24 = vector.load %arg8[%c0_28, %c0_29] : memref<8x256xf32, #tpu.memory_space<vmem>>, vector<8x32xf32>
    tpu.vector_store %arg8[%c0_28, %c0_29], %23 {strides = array<i32>} : memref<8x256xf32, #tpu.memory_space<vmem>>, vector<8x32xf32>,
    %cst_30 = arith.constant dense<0.000000e+00> : vector<8x3xf32>
    %25 = tpu.matmul %23, %10, %cst_30 {dimension_numbers = #tpu.dot_dimension_numbers<[1], [0], [0], [1], [0, 0, 1, 1], [], []>} : vector<8x32xf32>, vector<32x3xf32>, vector<8x3xf32> -> vector<8x3xf32>
    %26 = arith.addf %25, %16 : vector<8x3xf32>
    %c0_31 = arith.constant 0 : index
    %c0_32 = arith.constant 0 : index
    %27 = vector.load %arg7[%c0_31, %c0_32] : memref<8x24xf32, #tpu.memory_space<vmem>>, vector<8x3xf32>
    tpu.vector_store %arg7[%c0_31, %c0_32], %26 {strides = array<i32>} : memref<8x24xf32, #tpu.memory_space<vmem>>, vector<8x3xf32>,
    %c0_33 = arith.constant 0 : index
    %c4 = arith.constant 4 : index
    %28 = vector.load %arg9[%c0_33, %c4] : memref<8x32xf32, #tpu.memory_space<vmem>>, vector<8x4xf32>
    %cst_34 = arith.constant dense<0.000000e+00> : vector<8x32xf32>
    %29 = tpu.matmul %28, %8, %cst_34 {dimension_numbers = #tpu.dot_dimension_numbers<[1], [0], [0], [1], [0, 0, 1, 1], [], []>} : vector<8x4xf32>, vector<4x32xf32>, vector<8x32xf32> -> vector<8x32xf32>
    %cst_35 = arith.constant dense<0.000000e+00> : vector<8x32xf32>
    %30 = tpu.matmul %23, %9, %cst_35 {dimension_numbers = #tpu.dot_dimension_numbers<[1], [0], [0], [1], [0, 0, 1, 1], [], []>} : vector<8x32xf32>, vector<32x32xf32>, vector<8x32xf32> -> vector<8x32xf32>
    %31 = arith.addf %29, %30 : vector<8x32xf32>
    %32 = arith.addf %31, %13 : vector<8x32xf32>
    %33 = math.tanh %32 : vector<8x32xf32>
    %c0_36 = arith.constant 0 : index
    %c32 = arith.constant 32 : index
    %34 = vector.load %arg8[%c0_36, %c32] : memref<8x256xf32, #tpu.memory_space<vmem>>, vector<8x32xf32>
    tpu.vector_store %arg8[%c0_36, %c32], %33 {strides = array<i32>} : memref<8x256xf32, #tpu.memory_space<vmem>>, vector<8x32xf32>,
    %cst_37 = arith.constant dense<0.000000e+00> : vector<8x3xf32>
    %35 = tpu.matmul %33, %10, %cst_37 {dimension_numbers = #tpu.dot_dimension_numbers<[1], [0], [0], [1], [0, 0, 1, 1], [], []>} : vector<8x32xf32>, vector<32x3xf32>, vector<8x3xf32> -> vector<8x3xf32>
    %36 = arith.addf %35, %16 : vector<8x3xf32>
    %c0_38 = arith.constant 0 : index
    %c3 = arith.constant 3 : index
    %37 = vector.load %arg7[%c0_38, %c3] : memref<8x24xf32, #tpu.memory_space<vmem>>, vector<8x3xf32>
    tpu.vector_store %arg7[%c0_38, %c3], %36 {strides = array<i32>} : memref<8x24xf32, #tpu.memory_space<vmem>>, vector<8x3xf32>,
    %c0_39 = arith.constant 0 : index
    %c8 = arith.constant 8 : index
    %38 = vector.load %arg9[%c0_39, %c8] : memref<8x32xf32, #tpu.memory_space<vmem>>, vector<8x4xf32>
    %cst_40 = arith.constant dense<0.000000e+00> : vector<8x32xf32>
    %39 = tpu.matmul %38, %8, %cst_40 {dimension_numbers = #tpu.dot_dimension_numbers<[1], [0], [0], [1], [0, 0, 1, 1], [], []>} : vector<8x4xf32>, vector<4x32xf32>, vector<8x32xf32> -> vector<8x32xf32>
    %cst_41 = arith.constant dense<0.000000e+00> : vector<8x32xf32>
    %40 = tpu.matmul %33, %9, %cst_41 {dimension_numbers = #tpu.dot_dimension_numbers<[1], [0], [0], [1], [0, 0, 1, 1], [], []>} : vector<8x32xf32>, vector<32x32xf32>, vector<8x32xf32> -> vector<8x32xf32>
    %41 = arith.addf %39, %40 : vector<8x32xf32>
    %42 = arith.addf %41, %13 : vector<8x32xf32>
    %43 = math.tanh %42 : vector<8x32xf32>
    %c0_42 = arith.constant 0 : index
    %c64 = arith.constant 64 : index
    %44 = vector.load %arg8[%c0_42, %c64] : memref<8x256xf32, #tpu.memory_space<vmem>>, vector<8x32xf32>
    tpu.vector_store %arg8[%c0_42, %c64], %43 {strides = array<i32>} : memref<8x256xf32, #tpu.memory_space<vmem>>, vector<8x32xf32>,
    %cst_43 = arith.constant dense<0.000000e+00> : vector<8x3xf32>
    %45 = tpu.matmul %43, %10, %cst_43 {dimension_numbers = #tpu.dot_dimension_numbers<[1], [0], [0], [1], [0, 0, 1, 1], [], []>} : vector<8x32xf32>, vector<32x3xf32>, vector<8x3xf32> -> vector<8x3xf32>
    %46 = arith.addf %45, %16 : vector<8x3xf32>
    %c0_44 = arith.constant 0 : index
    %c6 = arith.constant 6 : index
    %47 = vector.load %arg7[%c0_44, %c6] : memref<8x24xf32, #tpu.memory_space<vmem>>, vector<8x3xf32>
    tpu.vector_store %arg7[%c0_44, %c6], %46 {strides = array<i32>} : memref<8x24xf32, #tpu.memory_space<vmem>>, vector<8x3xf32>,
    %c0_45 = arith.constant 0 : index
    %c12 = arith.constant 12 : index
    %48 = vector.load %arg9[%c0_45, %c12] : memref<8x32xf32, #tpu.memory_space<vmem>>, vector<8x4xf32>
    %cst_46 = arith.constant dense<0.000000e+00> : vector<8x32xf32>
    %49 = tpu.matmul %48, %8, %cst_46 {dimension_numbers = #tpu.dot_dimension_numbers<[1], [0], [0], [1], [0, 0, 1, 1], [], []>} : vector<8x4xf32>, vector<4x32xf32>, vector<8x32xf32> -> vector<8x32xf32>
    %cst_47 = arith.constant dense<0.000000e+00> : vector<8x32xf32>
    %50 = tpu.matmul %43, %9, %cst_47 {dimension_numbers = #tpu.dot_dimension_numbers<[1], [0], [0], [1], [0, 0, 1, 1], [], []>} : vector<8x32xf32>, vector<32x32xf32>, vector<8x32xf32> -> vector<8x32xf32>
    %51 = arith.addf %49, %50 : vector<8x32xf32>
    %52 = arith.addf %51, %13 : vector<8x32xf32>
    %53 = math.tanh %52 : vector<8x32xf32>
    %c0_48 = arith.constant 0 : index
    %c96 = arith.constant 96 : index
    %54 = vector.load %arg8[%c0_48, %c96] : memref<8x256xf32, #tpu.memory_space<vmem>>, vector<8x32xf32>
    tpu.vector_store %arg8[%c0_48, %c96], %53 {strides = array<i32>} : memref<8x256xf32, #tpu.memory_space<vmem>>, vector<8x32xf32>,
    %cst_49 = arith.constant dense<0.000000e+00> : vector<8x3xf32>
    %55 = tpu.matmul %53, %10, %cst_49 {dimension_numbers = #tpu.dot_dimension_numbers<[1], [0], [0], [1], [0, 0, 1, 1], [], []>} : vector<8x32xf32>, vector<32x3xf32>, vector<8x3xf32> -> vector<8x3xf32>
    %56 = arith.addf %55, %16 : vector<8x3xf32>
    %c0_50 = arith.constant 0 : index
    %c9 = arith.constant 9 : index
    %57 = vector.load %arg7[%c0_50, %c9] : memref<8x24xf32, #tpu.memory_space<vmem>>, vector<8x3xf32>
    tpu.vector_store %arg7[%c0_50, %c9], %56 {strides = array<i32>} : memref<8x24xf32, #tpu.memory_space<vmem>>, vector<8x3xf32>,
    %c0_51 = arith.constant 0 : index
    %c16 = arith.constant 16 : index
    %58 = vector.load %arg9[%c0_51, %c16] : memref<8x32xf32, #tpu.memory_space<vmem>>, vector<8x4xf32>
    %cst_52 = arith.constant dense<0.000000e+00> : vector<8x32xf32>
    %59 = tpu.matmul %58, %8, %cst_52 {dimension_numbers = #tpu.dot_dimension_numbers<[1], [0], [0], [1], [0, 0, 1, 1], [], []>} : vector<8x4xf32>, vector<4x32xf32>, vector<8x32xf32> -> vector<8x32xf32>
    %cst_53 = arith.constant dense<0.000000e+00> : vector<8x32xf32>
    %60 = tpu.matmul %53, %9, %cst_53 {dimension_numbers = #tpu.dot_dimension_numbers<[1], [0], [0], [1], [0, 0, 1, 1], [], []>} : vector<8x32xf32>, vector<32x32xf32>, vector<8x32xf32> -> vector<8x32xf32>
    %61 = arith.addf %59, %60 : vector<8x32xf32>
    %62 = arith.addf %61, %13 : vector<8x32xf32>
    %63 = math.tanh %62 : vector<8x32xf32>
    %c0_54 = arith.constant 0 : index
    %c128 = arith.constant 128 : index
    %64 = vector.load %arg8[%c0_54, %c128] : memref<8x256xf32, #tpu.memory_space<vmem>>, vector<8x32xf32>
    tpu.vector_store %arg8[%c0_54, %c128], %63 {strides = array<i32>} : memref<8x256xf32, #tpu.memory_space<vmem>>, vector<8x32xf32>,
    %cst_55 = arith.constant dense<0.000000e+00> : vector<8x3xf32>
    %65 = tpu.matmul %63, %10, %cst_55 {dimension_numbers = #tpu.dot_dimension_numbers<[1], [0], [0], [1], [0, 0, 1, 1], [], []>} : vector<8x32xf32>, vector<32x3xf32>, vector<8x3xf32> -> vector<8x3xf32>
    %66 = arith.addf %65, %16 : vector<8x3xf32>
    %c0_56 = arith.constant 0 : index
    %c12_57 = arith.constant 12 : index
    %67 = vector.load %arg7[%c0_56, %c12_57] : memref<8x24xf32, #tpu.memory_space<vmem>>, vector<8x3xf32>
    tpu.vector_store %arg7[%c0_56, %c12_57], %66 {strides = array<i32>} : memref<8x24xf32, #tpu.memory_space<vmem>>, vector<8x3xf32>,
    %c0_58 = arith.constant 0 : index
    %c20 = arith.constant 20 : index
    %68 = vector.load %arg9[%c0_58, %c20] : memref<8x32xf32, #tpu.memory_space<vmem>>, vector<8x4xf32>
    %cst_59 = arith.constant dense<0.000000e+00> : vector<8x32xf32>
    %69 = tpu.matmul %68, %8, %cst_59 {dimension_numbers = #tpu.dot_dimension_numbers<[1], [0], [0], [1], [0, 0, 1, 1], [], []>} : vector<8x4xf32>, vector<4x32xf32>, vector<8x32xf32> -> vector<8x32xf32>
    %cst_60 = arith.constant dense<0.000000e+00> : vector<8x32xf32>
    %70 = tpu.matmul %63, %9, %cst_60 {dimension_numbers = #tpu.dot_dimension_numbers<[1], [0], [0], [1], [0, 0, 1, 1], [], []>} : vector<8x32xf32>, vector<32x32xf32>, vector<8x32xf32> -> vector<8x32xf32>
    %71 = arith.addf %69, %70 : vector<8x32xf32>
    %72 = arith.addf %71, %13 : vector<8x32xf32>
    %73 = math.tanh %72 : vector<8x32xf32>
    %c0_61 = arith.constant 0 : index
    %c160 = arith.constant 160 : index
    %74 = vector.load %arg8[%c0_61, %c160] : memref<8x256xf32, #tpu.memory_space<vmem>>, vector<8x32xf32>
    tpu.vector_store %arg8[%c0_61, %c160], %73 {strides = array<i32>} : memref<8x256xf32, #tpu.memory_space<vmem>>, vector<8x32xf32>,
    %cst_62 = arith.constant dense<0.000000e+00> : vector<8x3xf32>
    %75 = tpu.matmul %73, %10, %cst_62 {dimension_numbers = #tpu.dot_dimension_numbers<[1], [0], [0], [1], [0, 0, 1, 1], [], []>} : vector<8x32xf32>, vector<32x3xf32>, vector<8x3xf32> -> vector<8x3xf32>
    %76 = arith.addf %75, %16 : vector<8x3xf32>
    %c0_63 = arith.constant 0 : index
    %c15 = arith.constant 15 : index
    %77 = vector.load %arg7[%c0_63, %c15] : memref<8x24xf32, #tpu.memory_space<vmem>>, vector<8x3xf32>
    tpu.vector_store %arg7[%c0_63, %c15], %76 {strides = array<i32>} : memref<8x24xf32, #tpu.memory_space<vmem>>, vector<8x3xf32>,
    %c0_64 = arith.constant 0 : index
    %c24 = arith.constant 24 : index
    %78 = vector.load %arg9[%c0_64, %c24] : memref<8x32xf32, #tpu.memory_space<vmem>>, vector<8x4xf32>
    %cst_65 = arith.constant dense<0.000000e+00> : vector<8x32xf32>
    %79 = tpu.matmul %78, %8, %cst_65 {dimension_numbers = #tpu.dot_dimension_numbers<[1], [0], [0], [1], [0, 0, 1, 1], [], []>} : vector<8x4xf32>, vector<4x32xf32>, vector<8x32xf32> -> vector<8x32xf32>
    %cst_66 = arith.constant dense<0.000000e+00> : vector<8x32xf32>
    %80 = tpu.matmul %73, %9, %cst_66 {dimension_numbers = #tpu.dot_dimension_numbers<[1], [0], [0], [1], [0, 0, 1, 1], [], []>} : vector<8x32xf32>, vector<32x32xf32>, vector<8x32xf32> -> vector<8x32xf32>
    %81 = arith.addf %79, %80 : vector<8x32xf32>
    %82 = arith.addf %81, %13 : vector<8x32xf32>
    %83 = math.tanh %82 : vector<8x32xf32>
    %c0_67 = arith.constant 0 : index
    %c192 = arith.constant 192 : index
    %84 = vector.load %arg8[%c0_67, %c192] : memref<8x256xf32, #tpu.memory_space<vmem>>, vector<8x32xf32>
    tpu.vector_store %arg8[%c0_67, %c192], %83 {strides = array<i32>} : memref<8x256xf32, #tpu.memory_space<vmem>>, vector<8x32xf32>,
    %cst_68 = arith.constant dense<0.000000e+00> : vector<8x3xf32>
    %85 = tpu.matmul %83, %10, %cst_68 {dimension_numbers = #tpu.dot_dimension_numbers<[1], [0], [0], [1], [0, 0, 1, 1], [], []>} : vector<8x32xf32>, vector<32x3xf32>, vector<8x3xf32> -> vector<8x3xf32>
    %86 = arith.addf %85, %16 : vector<8x3xf32>
    %c0_69 = arith.constant 0 : index
    %c18 = arith.constant 18 : index
    %87 = vector.load %arg7[%c0_69, %c18] : memref<8x24xf32, #tpu.memory_space<vmem>>, vector<8x3xf32>
    tpu.vector_store %arg7[%c0_69, %c18], %86 {strides = array<i32>} : memref<8x24xf32, #tpu.memory_space<vmem>>, vector<8x3xf32>,
    %c0_70 = arith.constant 0 : index
    %c28 = arith.constant 28 : index
    %88 = vector.load %arg9[%c0_70, %c28] : memref<8x32xf32, #tpu.memory_space<vmem>>, vector<8x4xf32>
    %cst_71 = arith.constant dense<0.000000e+00> : vector<8x32xf32>
    %89 = tpu.matmul %88, %8, %cst_71 {dimension_numbers = #tpu.dot_dimension_numbers<[1], [0], [0], [1], [0, 0, 1, 1], [], []>} : vector<8x4xf32>, vector<4x32xf32>, vector<8x32xf32> -> vector<8x32xf32>
    %cst_72 = arith.constant dense<0.000000e+00> : vector<8x32xf32>
    %90 = tpu.matmul %83, %9, %cst_72 {dimension_numbers = #tpu.dot_dimension_numbers<[1], [0], [0], [1], [0, 0, 1, 1], [], []>} : vector<8x32xf32>, vector<32x32xf32>, vector<8x32xf32> -> vector<8x32xf32>
    %91 = arith.addf %89, %90 : vector<8x32xf32>
    %92 = arith.addf %91, %13 : vector<8x32xf32>
    %93 = math.tanh %92 : vector<8x32xf32>
    %c0_73 = arith.constant 0 : index
    %c224 = arith.constant 224 : index
    %94 = vector.load %arg8[%c0_73, %c224] : memref<8x256xf32, #tpu.memory_space<vmem>>, vector<8x32xf32>
    tpu.vector_store %arg8[%c0_73, %c224], %93 {strides = array<i32>} : memref<8x256xf32, #tpu.memory_space<vmem>>, vector<8x32xf32>,
    %cst_74 = arith.constant dense<0.000000e+00> : vector<8x3xf32>
    %95 = tpu.matmul %93, %10, %cst_74 {dimension_numbers = #tpu.dot_dimension_numbers<[1], [0], [0], [1], [0, 0, 1, 1], [], []>} : vector<8x32xf32>, vector<32x3xf32>, vector<8x3xf32> -> vector<8x3xf32>
    %96 = arith.addf %95, %16 : vector<8x3xf32>
    %c0_75 = arith.constant 0 : index
    %c21 = arith.constant 21 : index
    %97 = vector.load %arg7[%c0_75, %c21] : memref<8x24xf32, #tpu.memory_space<vmem>>, vector<8x3xf32>
    tpu.vector_store %arg7[%c0_75, %c21], %96 {strides = array<i32>} : memref<8x24xf32, #tpu.memory_space<vmem>>, vector<8x3xf32>,
    return
  }
}

</mosaic_0001>

<llo_original>
// kernel: rnn_bel_forward.1
$region0: #{rnn_bel_forward.1}
  #allocation0 [shape = 'u32[]', space=smem, size = 0x4, offset = 0x4, fixed_abs, tag = 'smem constant byte address 0x4 - core index']
  #allocation1 [shape = 'u32[72,128]{1,0:T(1,128)}', space=vmem, size = 0x9000, scoped, tag = 'internal scratch']
  #allocation2 [shape = 'f32[8,32]{1,0:T(8,128)}', space=vmem, size = 0x1000, scoped, tag = 'scratch operand']
  #allocation3 [shape = 'f32[8,32]{1,0:T(8,128)}', space=vmem, size = 0x1000, scoped, tag = 'scratch operand']
  %s0 = inlined_call_operand.vmem [shape: f32[2,32], index: 0, kind: input, shape index: {}]
  %s1 = inlined_call_operand.vmem [shape: f32[2,32], index: 1, kind: input, shape index: {}]
  %s2 = inlined_call_operand.vmem [shape: f32[4,32], index: 2, kind: input, shape index: {}]
  %s3 = inlined_call_operand.vmem [shape: f32[32,32], index: 3, kind: input, shape index: {}]
  %s4 = inlined_call_operand.vmem [shape: f32[1,32], index: 4, kind: input, shape index: {}]
  %s5 = inlined_call_operand.vmem [shape: f32[32,3], index: 5, kind: input, shape index: {}]
  %s6 = inlined_call_operand.vmem [shape: f32[1,3], index: 6, kind: input, shape index: {}]
  %s7 = inlined_call_operand.vmem [shape: f32[8,24], index: 7, kind: output, shape index: {0}]
  %s8 = inlined_call_operand.vmem [shape: f32[8,256], index: 8, kind: output, shape index: {1}]
  %9 = xla_tuple %s7, %s8
  %s10 = sld [smem:[#allocation0]]
  $region46: #{rnn_bel_forward.1} parent=0
    _
  %s12 = ssub.s32 1, %s10
  %s13 = scalar_select 0, %s12, %s10
  // Predicated region
  $region2: #{rnn_bel_forward.1} parent=0 // pred_check
    _
  $region3: #{rnn_bel_forward.1} parent=0 // pred_check_branch
    %15 = sbr.rel (0) target = $region5
  $region4: #{rnn_bel_forward.1} parent=0 // pred_region
    _
  $region5: #{rnn_bel_forward.1} parent=0 // pred_fallthru
    _
  // Predicated region
  $region6: #{rnn_bel_forward.1} parent=0 // pred_check
    _
  $region7: #{rnn_bel_forward.1} parent=0 // pred_check_branch
    %17 = sbr.rel (0) target = $region9
  $region8: #{rnn_bel_forward.1} parent=0 // pred_region
    _
  $region9: #{rnn_bel_forward.1} parent=0 // pred_fallthru
    _
  // Predicated region
  $region10: #{rnn_bel_forward.1} parent=0 // pred_check
    _
  $region11: #{rnn_bel_forward.1} parent=0 // pred_check_branch
    %19 = sbr.rel (0) target = $region13
  $region12: #{rnn_bel_forward.1} parent=0 // pred_region
    _
  $region13: #{rnn_bel_forward.1} parent=0 // pred_fallthru
    _
  // Predicated region
  $region14: #{rnn_bel_forward.1} parent=0 // pred_check
    _
  $region15: #{rnn_bel_forward.1} parent=0 // pred_check_branch
    %21 = sbr.rel (0) target = $region17
  $region16: #{rnn_bel_forward.1} parent=0 // pred_region
    _
  $region17: #{rnn_bel_forward.1} parent=0 // pred_fallthru
    _
  // Predicated region
  $region18: #{rnn_bel_forward.1} parent=0 // pred_check
    _
  $region19: #{rnn_bel_forward.1} parent=0 // pred_check_branch
    %23 = sbr.rel (0) target = $region21
  $region20: #{rnn_bel_forward.1} parent=0 // pred_region
    _
  $region21: #{rnn_bel_forward.1} parent=0 // pred_fallthru
    _
  // Predicated region
  $region22: #{rnn_bel_forward.1} parent=0 // pred_check
    _
  $region23: #{rnn_bel_forward.1} parent=0 // pred_check_branch
    %25 = sbr.rel (0) target = $region25
  $region24: #{rnn_bel_forward.1} parent=0 // pred_region
    _
  $region25: #{rnn_bel_forward.1} parent=0 // pred_fallthru
    _
  // Predicated region
  $region26: #{rnn_bel_forward.1} parent=0 // pred_check
    _
  $region27: #{rnn_bel_forward.1} parent=0 // pred_check_branch
    %27 = sbr.rel (0) target = $region29
  $region28: #{rnn_bel_forward.1} parent=0 // pred_region
    _
  $region29: #{rnn_bel_forward.1} parent=0 // pred_fallthru
    _
  %vm28 = vcmask 261120
  %29 = vst.msk [vmem:[#allocation2] sm:$0xff] %vm28, 0.0
  %v30 = vld [vmem:[%s0] sm:$0x3]
  %vm31 = vcmask 254976
  %32 = vst.msk [vmem:[#allocation2] sm:$0x3] %vm31, %v30
  %33 = vst.msk [vmem:[#allocation3] sm:$0xff] %vm28, 0.0
  %v34 = vld [vmem:[%s1] sm:$0x3]
  %35 = vst.msk [vmem:[#allocation3] sm:$0x3] %vm31, %v34
  %v36 = vld [vmem:[%s2] sm:$0xf]
  %v37 = vld [vmem:[%s3] sm:$0xff]
  %v38 = vld [vmem:[%s3 + $0x8] sm:$0xff]
  %v39 = vld [vmem:[%s3 + $0x10] sm:$0xff]
  %v40 = vld [vmem:[%s3 + $0x18] sm:$0xff]
  %v41 = vld [vmem:[%s5] sm:$0xff]
  %v42 = vld [vmem:[%s5 + $0x8] sm:$0xff]
  %v43 = vld [vmem:[%s5 + $0x10] sm:$0xff]
  %v44 = vld [vmem:[%s5 + $0x18] sm:$0xff]
  %v45 = vld [vmem:[%s4] sm:$0x1]
  %v47 = vperm.slane %v45, 0
  %v49 = vld [vmem:[%s6] sm:$0x1]
  %v51 = vperm.slane %v49, 0
  %v53 = vld [vmem:[#allocation3] sm:$0xff]
  %v54 = vld [vmem:[#allocation2] sm:$0xff]
  %v56 = vsel %vm28, %v53, 0
  %58 = vmatpush.msra.mxu0 0.0
  %59 = vmatpush.msra.mxu0 0.0
  %60 = vmatpush.msra.mxu0 0.0
  %61 = vmatpush.msra.mxu0 0.0
  %62 = vmatpush.msra.mxu0 0.0
  %63 = vmatpush.msra.mxu0 0.0
  %64 = vmatpush.msra.mxu0 0.0
  %65 = vmatpush.msra.mxu0 0.0
  %66 = vmatpush.msra.mxu0 0.0
  %67 = vmatpush.msra.mxu0 0.0
  %68 = vmatpush.msra.mxu0 0.0
  %69 = vmatpush.msra.mxu0 0.0
  %70 = vmatpush.msra.mxu0 %v40
  %71 = vmatpush.msra.mxu0 %v39
  %72 = vmatpush.msra.mxu0 %v38
  %73 = vmatpush.msra.mxu0 %v37
  %74 = vmatmul.f32.gmra.mxu0 %v56
  %v75 = vpop.f32.mrf.mxu0
  %v76 = vadd.f32 0.0, %v75
  %77 = vdwg.mxu0
  %vm78 = vcmask 31744
  %v80 = vsel %vm78, %v54, 0
  %vm82 = vcmask 1043456
  %v84 = vsel %vm82, %v36, 0
  %86 = vmatpush.msra.mxu0 0.0
  %87 = vmatpush.msra.mxu0 0.0
  %88 = vmatpush.msra.mxu0 0.0
  %89 = vmatpush.msra.mxu0 0.0
  %90 = vmatpush.msra.mxu0 0.0
  %91 = vmatpush.msra.mxu0 0.0
  %92 = vmatpush.msra.mxu0 0.0
  %93 = vmatpush.msra.mxu0 0.0
  %94 = vmatpush.msra.mxu0 0.0
  %95 = vmatpush.msra.mxu0 0.0
  %96 = vmatpush.msra.mxu0 0.0
  %97 = vmatpush.msra.mxu0 0.0
  %98 = vmatpush.msra.mxu0 0.0
  %99 = vmatpush.msra.mxu0 0.0
  %100 = vmatpush.msra.mxu0 0.0
  %101 = vmatpush.msra.mxu0 %v84
  %102 = vmatmul.f32.gmra.mxu0 %v80
  %v103 = vpop.f32.mrf.mxu0
  %v104 = vadd.f32 %v76, %v103
  %105 = vdwg.mxu0
  %v106 = vadd.f32 %v104, %v47
  %v107 = vtanh.pop %v106
  %108 = vst.msk [vmem:[%s8] sm:$0xff] %vm28, %v107
  %v110 = vsel %vm28, %v107, 0
  %112 = vmatpush.msra.mxu0 0.0
  %113 = vmatpush.msra.mxu0 0.0
  %114 = vmatpush.msra.mxu0 0.0
  %115 = vmatpush.msra.mxu0 0.0
  %116 = vmatpush.msra.mxu0 0.0
  %117 = vmatpush.msra.mxu0 0.0
  %118 = vmatpush.msra.mxu0 0.0
  %119 = vmatpush.msra.mxu0 0.0
  %120 = vmatpush.msra.mxu0 0.0
  %121 = vmatpush.msra.mxu0 0.0
  %122 = vmatpush.msra.mxu0 0.0
  %123 = vmatpush.msra.mxu0 0.0
  %124 = vmatpush.msra.mxu0 %v44
  %125 = vmatpush.msra.mxu0 %v43
  %126 = vmatpush.msra.mxu0 %v42
  %127 = vmatpush.msra.mxu0 %v41
  %128 = vmatmul.f32.gmra.mxu0 %v110
  %v129 = vpop.f32.mrf.mxu0
  %v130 = vadd.f32 %v51, %v129
  %131 = vdwg.mxu0
  %vm132 = vcmask 23552
  %133 = vst.msk [vmem:[%s7] sm:$0xff] %vm132, %v130
  %v134 = vld [vmem:[#allocation2] sm:$0xff]
  %135 = vmatpush.msra.mxu0 0.0
  %136 = vmatpush.msra.mxu0 0.0
  %137 = vmatpush.msra.mxu0 0.0
  %138 = vmatpush.msra.mxu0 0.0
  %139 = vmatpush.msra.mxu0 0.0
  %140 = vmatpush.msra.mxu0 0.0
  %141 = vmatpush.msra.mxu0 0.0
  %142 = vmatpush.msra.mxu0 0.0
  %143 = vmatpush.msra.mxu0 0.0
  %144 = vmatpush.msra.mxu0 0.0
  %145 = vmatpush.msra.mxu0 0.0
  %146 = vmatpush.msra.mxu0 0.0
  %147 = vmatpush.msra.mxu0 %v40
  %148 = vmatpush.msra.mxu0 %v39
  %149 = vmatpush.msra.mxu0 %v38
  %150 = vmatpush.msra.mxu0 %v37
  %151 = vmatmul.f32.gmra.mxu0 %v110
  %v152 = vpop.f32.mrf.mxu0
  %v153 = vadd.f32 0.0, %v152
  %154 = vdwg.mxu0
  %156 = vrot.lane.b32.xlu0 %v134, 124
  %v157 = vpop.permute.xlu0 %156
  %v158 = vsel %vm78, %v157, 0
  %160 = vmatpush.msra.mxu0 0.0
  %161 = vmatpush.msra.mxu0 0.0
  %162 = vmatpush.msra.mxu0 0.0
  %163 = vmatpush.msra.mxu0 0.0
  %164 = vmatpush.msra.mxu0 0.0
  %165 = vmatpush.msra.mxu0 0.0
  %166 = vmatpush.msra.mxu0 0.0
  %167 = vmatpush.msra.mxu0 0.0
  %168 = vmatpush.msra.mxu0 0.0
  %169 = vmatpush.msra.mxu0 0.0
  %170 = vmatpush.msra.mxu0 0.0
  %171 = vmatpush.msra.mxu0 0.0
  %172 = vmatpush.msra.mxu0 0.0
  %173 = vmatpush.msra.mxu0 0.0
  %174 = vmatpush.msra.mxu0 0.0
  %175 = vmatpush.msra.mxu0 %v84
  %176 = vmatmul.f32.gmra.mxu0 %v158
  %v177 = vpop.f32.mrf.mxu0
  %v178 = vadd.f32 %v153, %v177
  %179 = vdwg.mxu0
  %v180 = vadd.f32 %v178, %v47
  %v181 = vtanh.pop %v180
  %183 = vrot.lane.b32.xlu0 %v181, 32
  %v184 = vpop.permute.xlu0 %183
  %vm186 = vcmask 523520
  %187 = vst.msk [vmem:[%s8] sm:$0xff] %vm186, %v184
  %v188 = vsel %vm28, %v181, 0
  %190 = vmatpush.msra.mxu0 0.0
  %191 = vmatpush.msra.mxu0 0.0
  %192 = vmatpush.msra.mxu0 0.0
  %193 = vmatpush.msra.mxu0 0.0
  %194 = vmatpush.msra.mxu0 0.0
  %195 = vmatpush.msra.mxu0 0.0
  %196 = vmatpush.msra.mxu0 0.0
  %197 = vmatpush.msra.mxu0 0.0
  %198 = vmatpush.msra.mxu0 0.0
  %199 = vmatpush.msra.mxu0 0.0
  %200 = vmatpush.msra.mxu0 0.0
  %201 = vmatpush.msra.mxu0 0.0
  %202 = vmatpush.msra.mxu0 %v44
  %203 = vmatpush.msra.mxu0 %v43
  %204 = vmatpush.msra.mxu0 %v42
  %205 = vmatpush.msra.mxu0 %v41
  %206 = vmatmul.f32.gmra.mxu0 %v188
  %v207 = vpop.f32.mrf.mxu0
  %v208 = vadd.f32 %v51, %v207
  %209 = vdwg.mxu0
  %211 = vrot.lane.b32.xlu0 %v208, 3
  %v212 = vpop.permute.xlu0 %211
  %vm214 = vcmask 48152
  %215 = vst.msk [vmem:[%s7] sm:$0xff] %vm214, %v212
  %v216 = vld [vmem:[#allocation2] sm:$0xff]
  %217 = vmatpush.msra.mxu0 0.0
  %218 = vmatpush.msra.mxu0 0.0
  %219 = vmatpush.msra.mxu0 0.0
  %220 = vmatpush.msra.mxu0 0.0
  %221 = vmatpush.msra.mxu0 0.0
  %222 = vmatpush.msra.mxu0 0.0
  %223 = vmatpush.msra.mxu0 0.0
  %224 = vmatpush.msra.mxu0 0.0
  %225 = vmatpush.msra.mxu0 0.0
  %226 = vmatpush.msra.mxu0 0.0
  %227 = vmatpush.msra.mxu0 0.0
  %228 = vmatpush.msra.mxu0 0.0
  %229 = vmatpush.msra.mxu0 %v40
  %230 = vmatpush.msra.mxu0 %v39
  %231 = vmatpush.msra.mxu0 %v38
  %232 = vmatpush.msra.mxu0 %v37
  %233 = vmatmul.f32.gmra.mxu0 %v188
  %v234 = vpop.f32.mrf.mxu0
  %v235 = vadd.f32 0.0, %v234
  %236 = vdwg.mxu0
  %238 = vrot.lane.b32.xlu0 %v216, 120
  %v239 = vpop.permute.xlu0 %238
  %v240 = vsel %vm78, %v239, 0
  %242 = vmatpush.msra.mxu0 0.0
  %243 = vmatpush.msra.mxu0 0.0
  %244 = vmatpush.msra.mxu0 0.0
  %245 = vmatpush.msra.mxu0 0.0
  %246 = vmatpush.msra.mxu0 0.0
  %247 = vmatpush.msra.mxu0 0.0
  %248 = vmatpush.msra.mxu0 0.0
  %249 = vmatpush.msra.mxu0 0.0
  %250 = vmatpush.msra.mxu0 0.0
  %251 = vmatpush.msra.mxu0 0.0
  %252 = vmatpush.msra.mxu0 0.0
  %253 = vmatpush.msra.mxu0 0.0
  %254 = vmatpush.msra.mxu0 0.0
  %255 = vmatpush.msra.mxu0 0.0
  %256 = vmatpush.msra.mxu0 0.0
  %257 = vmatpush.msra.mxu0 %v84
  %258 = vmatmul.f32.gmra.mxu0 %v240
  %v259 = vpop.f32.mrf.mxu0
  %v260 = vadd.f32 %v235, %v259
  %261 = vdwg.mxu0
  %v262 = vadd.f32 %v260, %v47
  %v263 = vtanh.pop %v262
  %265 = vrot.lane.b32.xlu0 %v263, 64
  %v266 = vpop.permute.xlu0 %265
  %vm268 = vcmask 785920
  %269 = vst.msk [vmem:[%s8] sm:$0xff] %vm268, %v266
  %v270 = vsel %vm28, %v263, 0
  %272 = vmatpush.msra.mxu0 0.0
  %273 = vmatpush.msra.mxu0 0.0
  %274 = vmatpush.msra.mxu0 0.0
  %275 = vmatpush.msra.mxu0 0.0
  %276 = vmatpush.msra.mxu0 0.0
  %277 = vmatpush.msra.mxu0 0.0
  %278 = vmatpush.msra.mxu0 0.0
  %279 = vmatpush.msra.mxu0 0.0
  %280 = vmatpush.msra.mxu0 0.0
  %281 = vmatpush.msra.mxu0 0.0
  %282 = vmatpush.msra.mxu0 0.0
  %283 = vmatpush.msra.mxu0 0.0
  %284 = vmatpush.msra.mxu0 %v44
  %285 = vmatpush.msra.mxu0 %v43
  %286 = vmatpush.msra.mxu0 %v42
  %287 = vmatpush.msra.mxu0 %v41
  %288 = vmatmul.f32.gmra.mxu0 %v270
  %v289 = vpop.f32.mrf.mxu0
  %v290 = vadd.f32 %v51, %v289
  %291 = vdwg.mxu0
  %293 = vrot.lane.b32.xlu0 %v290, 6
  %v294 = vpop.permute.xlu0 %293
  %vm296 = vcmask 72752
  %297 = vst.msk [vmem:[%s7] sm:$0xff] %vm296, %v294
  %v298 = vld [vmem:[#allocation2] sm:$0xff]
  %299 = vmatpush.msra.mxu0 0.0
  %300 = vmatpush.msra.mxu0 0.0
  %301 = vmatpush.msra.mxu0 0.0
  %302 = vmatpush.msra.mxu0 0.0
  %303 = vmatpush.msra.mxu0 0.0
  %304 = vmatpush.msra.mxu0 0.0
  %305 = vmatpush.msra.mxu0 0.0
  %306 = vmatpush.msra.mxu0 0.0
  %307 = vmatpush.msra.mxu0 0.0
  %308 = vmatpush.msra.mxu0 0.0
  %309 = vmatpush.msra.mxu0 0.0
  %310 = vmatpush.msra.mxu0 0.0
  %311 = vmatpush.msra.mxu0 %v40
  %312 = vmatpush.msra.mxu0 %v39
  %313 = vmatpush.msra.mxu0 %v38
  %314 = vmatpush.msra.mxu0 %v37
  %315 = vmatmul.f32.gmra.mxu0 %v270
  %v316 = vpop.f32.mrf.mxu0
  %v317 = vadd.f32 0.0, %v316
  %318 = vdwg.mxu0
  %320 = vrot.lane.b32.xlu0 %v298, 116
  %v321 = vpop.permute.xlu0 %320
  %v322 = vsel %vm78, %v321, 0
  %324 = vmatpush.msra.mxu0 0.0
  %325 = vmatpush.msra.mxu0 0.0
  %326 = vmatpush.msra.mxu0 0.0
  %327 = vmatpush.msra.mxu0 0.0
  %328 = vmatpush.msra.mxu0 0.0
  %329 = vmatpush.msra.mxu0 0.0
  %330 = vmatpush.msra.mxu0 0.0
  %331 = vmatpush.msra.mxu0 0.0
  %332 = vmatpush.msra.mxu0 0.0
  %333 = vmatpush.msra.mxu0 0.0
  %334 = vmatpush.msra.mxu0 0.0
  %335 = vmatpush.msra.mxu0 0.0
  %336 = vmatpush.msra.mxu0 0.0
  %337 = vmatpush.msra.mxu0 0.0
  %338 = vmatpush.msra.mxu0 0.0
  %339 = vmatpush.msra.mxu0 %v84
  %340 = vmatmul.f32.gmra.mxu0 %v322
  %v341 = vpop.f32.mrf.mxu0
  %v342 = vadd.f32 %v317, %v341
  %343 = vdwg.mxu0
  %v344 = vadd.f32 %v342, %v47
  %v345 = vtanh.pop %v344
  %347 = vrot.lane.b32.xlu0 %v345, 96
  %v348 = vpop.permute.xlu0 %347
  %vm350 = vcmask 1048320
  %351 = vst.msk [vmem:[%s8] sm:$0xff] %vm350, %v348
  %v352 = vsel %vm28, %v345, 0
  %354 = vmatpush.msra.mxu0 0.0
  %355 = vmatpush.msra.mxu0 0.0
  %356 = vmatpush.msra.mxu0 0.0
  %357 = vmatpush.msra.mxu0 0.0
  %358 = vmatpush.msra.mxu0 0.0
  %359 = vmatpush.msra.mxu0 0.0
  %360 = vmatpush.msra.mxu0 0.0
  %361 = vmatpush.msra.mxu0 0.0
  %362 = vmatpush.msra.mxu0 0.0
  %363 = vmatpush.msra.mxu0 0.0
  %364 = vmatpush.msra.mxu0 0.0
  %365 = vmatpush.msra.mxu0 0.0
  %366 = vmatpush.msra.mxu0 %v44
  %367 = vmatpush.msra.mxu0 %v43
  %368 = vmatpush.msra.mxu0 %v42
  %369 = vmatpush.msra.mxu0 %v41
  %370 = vmatmul.f32.gmra.mxu0 %v352
  %v371 = vpop.f32.mrf.mxu0
  %v372 = vadd.f32 %v51, %v371
  %373 = vdwg.mxu0
  %375 = vrot.lane.b32.xlu0 %v372, 9
  %v376 = vpop.permute.xlu0 %375
  %vm378 = vcmask 97352
  %379 = vst.msk [vmem:[%s7] sm:$0xff] %vm378, %v376
  %v380 = vld [vmem:[#allocation2] sm:$0xff]
  %381 = vmatpush.msra.mxu0 0.0
  %382 = vmatpush.msra.mxu0 0.0
  %383 = vmatpush.msra.mxu0 0.0
  %384 = vmatpush.msra.mxu0 0.0
  %385 = vmatpush.msra.mxu0 0.0
  %386 = vmatpush.msra.mxu0 0.0
  %387 = vmatpush.msra.mxu0 0.0
  %388 = vmatpush.msra.mxu0 0.0
  %389 = vmatpush.msra.mxu0 0.0
  %390 = vmatpush.msra.mxu0 0.0
  %391 = vmatpush.msra.mxu0 0.0
  %392 = vmatpush.msra.mxu0 0.0
  %393 = vmatpush.msra.mxu0 %v40
  %394 = vmatpush.msra.mxu0 %v39
  %395 = vmatpush.msra.mxu0 %v38
  %396 = vmatpush.msra.mxu0 %v37
  %397 = vmatmul.f32.gmra.mxu0 %v352
  %v398 = vpop.f32.mrf.mxu0
  %v399 = vadd.f32 0.0, %v398
  %400 = vdwg.mxu0
  %402 = vrot.lane.b32.xlu0 %v380, 112
  %v403 = vpop.permute.xlu0 %402
  %v404 = vsel %vm78, %v403, 0
  %406 = vmatpush.msra.mxu0 0.0
  %407 = vmatpush.msra.mxu0 0.0
  %408 = vmatpush.msra.mxu0 0.0
  %409 = vmatpush.msra.mxu0 0.0
  %410 = vmatpush.msra.mxu0 0.0
  %411 = vmatpush.msra.mxu0 0.0
  %412 = vmatpush.msra.mxu0 0.0
  %413 = vmatpush.msra.mxu0 0.0
  %414 = vmatpush.msra.mxu0 0.0
  %415 = vmatpush.msra.mxu0 0.0
  %416 = vmatpush.msra.mxu0 0.0
  %417 = vmatpush.msra.mxu0 0.0
  %418 = vmatpush.msra.mxu0 0.0
  %419 = vmatpush.msra.mxu0 0.0
  %420 = vmatpush.msra.mxu0 0.0
  %421 = vmatpush.msra.mxu0 %v84
  %422 = vmatmul.f32.gmra.mxu0 %v404
  %v423 = vpop.f32.mrf.mxu0
  %v424 = vadd.f32 %v399, %v423
  %425 = vdwg.mxu0
  %v426 = vadd.f32 %v424, %v47
  %v427 = vtanh.pop %v426
  %428 = vst.msk [vmem:[%s8 + $0x8] sm:$0xff] %vm28, %v427
  %v430 = vsel %vm28, %v427, 0
  %432 = vmatpush.msra.mxu0 0.0
  %433 = vmatpush.msra.mxu0 0.0
  %434 = vmatpush.msra.mxu0 0.0
  %435 = vmatpush.msra.mxu0 0.0
  %436 = vmatpush.msra.mxu0 0.0
  %437 = vmatpush.msra.mxu0 0.0
  %438 = vmatpush.msra.mxu0 0.0
  %439 = vmatpush.msra.mxu0 0.0
  %440 = vmatpush.msra.mxu0 0.0
  %441 = vmatpush.msra.mxu0 0.0
  %442 = vmatpush.msra.mxu0 0.0
  %443 = vmatpush.msra.mxu0 0.0
  %444 = vmatpush.msra.mxu0 %v44
  %445 = vmatpush.msra.mxu0 %v43
  %446 = vmatpush.msra.mxu0 %v42
  %447 = vmatpush.msra.mxu0 %v41
  %448 = vmatmul.f32.gmra.mxu0 %v430
  %v449 = vpop.f32.mrf.mxu0
  %v450 = vadd.f32 %v51, %v449
  %451 = vdwg.mxu0
  %453 = vrot.lane.b32.xlu0 %v450, 12
  %v454 = vpop.permute.xlu0 %453
  %vm456 = vcmask 121952
  %457 = vst.msk [vmem:[%s7] sm:$0xff] %vm456, %v454
  %v458 = vld [vmem:[#allocation2] sm:$0xff]
  %459 = vmatpush.msra.mxu0 0.0
  %460 = vmatpush.msra.mxu0 0.0
  %461 = vmatpush.msra.mxu0 0.0
  %462 = vmatpush.msra.mxu0 0.0
  %463 = vmatpush.msra.mxu0 0.0
  %464 = vmatpush.msra.mxu0 0.0
  %465 = vmatpush.msra.mxu0 0.0
  %466 = vmatpush.msra.mxu0 0.0
  %467 = vmatpush.msra.mxu0 0.0
  %468 = vmatpush.msra.mxu0 0.0
  %469 = vmatpush.msra.mxu0 0.0
  %470 = vmatpush.msra.mxu0 0.0
  %471 = vmatpush.msra.mxu0 %v40
  %472 = vmatpush.msra.mxu0 %v39
  %473 = vmatpush.msra.mxu0 %v38
  %474 = vmatpush.msra.mxu0 %v37
  %475 = vmatmul.f32.gmra.mxu0 %v430
  %v476 = vpop.f32.mrf.mxu0
  %v477 = vadd.f32 0.0, %v476
  %478 = vdwg.mxu0
  %480 = vrot.lane.b32.xlu0 %v458, 108
  %v481 = vpop.permute.xlu0 %480
  %v482 = vsel %vm78, %v481, 0
  %484 = vmatpush.msra.mxu0 0.0
  %485 = vmatpush.msra.mxu0 0.0
  %486 = vmatpush.msra.mxu0 0.0
  %487 = vmatpush.msra.mxu0 0.0
  %488 = vmatpush.msra.mxu0 0.0
  %489 = vmatpush.msra.mxu0 0.0
  %490 = vmatpush.msra.mxu0 0.0
  %491 = vmatpush.msra.mxu0 0.0
  %492 = vmatpush.msra.mxu0 0.0
  %493 = vmatpush.msra.mxu0 0.0
  %494 = vmatpush.msra.mxu0 0.0
  %495 = vmatpush.msra.mxu0 0.0
  %496 = vmatpush.msra.mxu0 0.0
  %497 = vmatpush.msra.mxu0 0.0
  %498 = vmatpush.msra.mxu0 0.0
  %499 = vmatpush.msra.mxu0 %v84
  %500 = vmatmul.f32.gmra.mxu0 %v482
  %v501 = vpop.f32.mrf.mxu0
  %v502 = vadd.f32 %v477, %v501
  %503 = vdwg.mxu0
  %v504 = vadd.f32 %v502, %v47
  %v505 = vtanh.pop %v504
  %507 = vrot.lane.b32.xlu0 %v505, 32
  %v508 = vpop.permute.xlu0 %507
  %510 = vst.msk [vmem:[%s8 + $0x8] sm:$0xff] %vm186, %v508
  %v511 = vsel %vm28, %v505, 0
  %513 = vmatpush.msra.mxu0 0.0
  %514 = vmatpush.msra.mxu0 0.0
  %515 = vmatpush.msra.mxu0 0.0
  %516 = vmatpush.msra.mxu0 0.0
  %517 = vmatpush.msra.mxu0 0.0
  %518 = vmatpush.msra.mxu0 0.0
  %519 = vmatpush.msra.mxu0 0.0
  %520 = vmatpush.msra.mxu0 0.0
  %521 = vmatpush.msra.mxu0 0.0
  %522 = vmatpush.msra.mxu0 0.0
  %523 = vmatpush.msra.mxu0 0.0
  %524 = vmatpush.msra.mxu0 0.0
  %525 = vmatpush.msra.mxu0 %v44
  %526 = vmatpush.msra.mxu0 %v43
  %527 = vmatpush.msra.mxu0 %v42
  %528 = vmatpush.msra.mxu0 %v41
  %529 = vmatmul.f32.gmra.mxu0 %v511
  %v530 = vpop.f32.mrf.mxu0
  %v531 = vadd.f32 %v51, %v530
  %532 = vdwg.mxu0
  %534 = vrot.lane.b32.xlu0 %v531, 15
  %v535 = vpop.permute.xlu0 %534
  %vm537 = vcmask 146552
  %538 = vst.msk [vmem:[%s7] sm:$0xff] %vm537, %v535
  %v539 = vld [vmem:[#allocation2] sm:$0xff]
  %540 = vmatpush.msra.mxu0 0.0
  %541 = vmatpush.msra.mxu0 0.0
  %542 = vmatpush.msra.mxu0 0.0
  %543 = vmatpush.msra.mxu0 0.0
  %544 = vmatpush.msra.mxu0 0.0
  %545 = vmatpush.msra.mxu0 0.0
  %546 = vmatpush.msra.mxu0 0.0
  %547 = vmatpush.msra.mxu0 0.0
  %548 = vmatpush.msra.mxu0 0.0
  %549 = vmatpush.msra.mxu0 0.0
  %550 = vmatpush.msra.mxu0 0.0
  %551 = vmatpush.msra.mxu0 0.0
  %552 = vmatpush.msra.mxu0 %v40
  %553 = vmatpush.msra.mxu0 %v39
  %554 = vmatpush.msra.mxu0 %v38
  %555 = vmatpush.msra.mxu0 %v37
  %556 = vmatmul.f32.gmra.mxu0 %v511
  %v557 = vpop.f32.mrf.mxu0
  %v558 = vadd.f32 0.0, %v557
  %559 = vdwg.mxu0
  %561 = vrot.lane.b32.xlu0 %v539, 104
  %v562 = vpop.permute.xlu0 %561
  %v563 = vsel %vm78, %v562, 0
  %565 = vmatpush.msra.mxu0 0.0
  %566 = vmatpush.msra.mxu0 0.0
  %567 = vmatpush.msra.mxu0 0.0
  %568 = vmatpush.msra.mxu0 0.0
  %569 = vmatpush.msra.mxu0 0.0
  %570 = vmatpush.msra.mxu0 0.0
  %571 = vmatpush.msra.mxu0 0.0
  %572 = vmatpush.msra.mxu0 0.0
  %573 = vmatpush.msra.mxu0 0.0
  %574 = vmatpush.msra.mxu0 0.0
  %575 = vmatpush.msra.mxu0 0.0
  %576 = vmatpush.msra.mxu0 0.0
  %577 = vmatpush.msra.mxu0 0.0
  %578 = vmatpush.msra.mxu0 0.0
  %579 = vmatpush.msra.mxu0 0.0
  %580 = vmatpush.msra.mxu0 %v84
  %581 = vmatmul.f32.gmra.mxu0 %v563
  %v582 = vpop.f32.mrf.mxu0
  %v583 = vadd.f32 %v558, %v582
  %584 = vdwg.mxu0
  %v585 = vadd.f32 %v583, %v47
  %v586 = vtanh.pop %v585
  %588 = vrot.lane.b32.xlu0 %v586, 64
  %v589 = vpop.permute.xlu0 %588
  %591 = vst.msk [vmem:[%s8 + $0x8] sm:$0xff] %vm268, %v589
  %v592 = vsel %vm28, %v586, 0
  %594 = vmatpush.msra.mxu0 0.0
  %595 = vmatpush.msra.mxu0 0.0
  %596 = vmatpush.msra.mxu0 0.0
  %597 = vmatpush.msra.mxu0 0.0
  %598 = vmatpush.msra.mxu0 0.0
  %599 = vmatpush.msra.mxu0 0.0
  %600 = vmatpush.msra.mxu0 0.0
  %601 = vmatpush.msra.mxu0 0.0
  %602 = vmatpush.msra.mxu0 0.0
  %603 = vmatpush.msra.mxu0 0.0
  %604 = vmatpush.msra.mxu0 0.0
  %605 = vmatpush.msra.mxu0 0.0
  %606 = vmatpush.msra.mxu0 %v44
  %607 = vmatpush.msra.mxu0 %v43
  %608 = vmatpush.msra.mxu0 %v42
  %609 = vmatpush.msra.mxu0 %v41
  %610 = vmatmul.f32.gmra.mxu0 %v592
  %v611 = vpop.f32.mrf.mxu0
  %v612 = vadd.f32 %v51, %v611
  %613 = vdwg.mxu0
  %615 = vrot.lane.b32.xlu0 %v612, 18
  %v616 = vpop.permute.xlu0 %615
  %vm618 = vcmask 171152
  %619 = vst.msk [vmem:[%s7] sm:$0xff] %vm618, %v616
  %v620 = vld [vmem:[#allocation2] sm:$0xff]
  %621 = vmatpush.msra.mxu0 0.0
  %622 = vmatpush.msra.mxu0 0.0
  %623 = vmatpush.msra.mxu0 0.0
  %624 = vmatpush.msra.mxu0 0.0
  %625 = vmatpush.msra.mxu0 0.0
  %626 = vmatpush.msra.mxu0 0.0
  %627 = vmatpush.msra.mxu0 0.0
  %628 = vmatpush.msra.mxu0 0.0
  %629 = vmatpush.msra.mxu0 0.0
  %630 = vmatpush.msra.mxu0 0.0
  %631 = vmatpush.msra.mxu0 0.0
  %632 = vmatpush.msra.mxu0 0.0
  %633 = vmatpush.msra.mxu0 %v40
  %634 = vmatpush.msra.mxu0 %v39
  %635 = vmatpush.msra.mxu0 %v38
  %636 = vmatpush.msra.mxu0 %v37
  %637 = vmatmul.f32.gmra.mxu0 %v592
  %v638 = vpop.f32.mrf.mxu0
  %v639 = vadd.f32 0.0, %v638
  %640 = vdwg.mxu0
  %642 = vrot.lane.b32.xlu0 %v620, 100
  %v643 = vpop.permute.xlu0 %642
  %v644 = vsel %vm78, %v643, 0
  %646 = vmatpush.msra.mxu0 0.0
  %647 = vmatpush.msra.mxu0 0.0
  %648 = vmatpush.msra.mxu0 0.0
  %649 = vmatpush.msra.mxu0 0.0
  %650 = vmatpush.msra.mxu0 0.0
  %651 = vmatpush.msra.mxu0 0.0
  %652 = vmatpush.msra.mxu0 0.0
  %653 = vmatpush.msra.mxu0 0.0
  %654 = vmatpush.msra.mxu0 0.0
  %655 = vmatpush.msra.mxu0 0.0
  %656 = vmatpush.msra.mxu0 0.0
  %657 = vmatpush.msra.mxu0 0.0
  %658 = vmatpush.msra.mxu0 0.0
  %659 = vmatpush.msra.mxu0 0.0
  %660 = vmatpush.msra.mxu0 0.0
  %661 = vmatpush.msra.mxu0 %v84
  %662 = vmatmul.f32.gmra.mxu0 %v644
  %v663 = vpop.f32.mrf.mxu0
  %v664 = vadd.f32 %v639, %v663
  %665 = vdwg.mxu0
  %v666 = vadd.f32 %v664, %v47
  %v667 = vtanh.pop %v666
  %669 = vrot.lane.b32.xlu0 %v667, 96
  %v670 = vpop.permute.xlu0 %669
  %672 = vst.msk [vmem:[%s8 + $0x8] sm:$0xff] %vm350, %v670
  %v673 = vsel %vm28, %v667, 0
  %675 = vmatpush.msra.mxu0 0.0
  %676 = vmatpush.msra.mxu0 0.0
  %677 = vmatpush.msra.mxu0 0.0
  %678 = vmatpush.msra.mxu0 0.0
  %679 = vmatpush.msra.mxu0 0.0
  %680 = vmatpush.msra.mxu0 0.0
  %681 = vmatpush.msra.mxu0 0.0
  %682 = vmatpush.msra.mxu0 0.0
  %683 = vmatpush.msra.mxu0 0.0
  %684 = vmatpush.msra.mxu0 0.0
  %685 = vmatpush.msra.mxu0 0.0
  %686 = vmatpush.msra.mxu0 0.0
  %687 = vmatpush.msra.mxu0 %v44
  %688 = vmatpush.msra.mxu0 %v43
  %689 = vmatpush.msra.mxu0 %v42
  %690 = vmatpush.msra.mxu0 %v41
  %691 = vmatmul.f32.gmra.mxu0 %v673
  %v692 = vpop.f32.mrf.mxu0
  %v693 = vadd.f32 %v51, %v692
  %694 = vdwg.mxu0
  %696 = vrot.lane.b32.xlu0 %v693, 21
  %v697 = vpop.permute.xlu0 %696
  %vm699 = vcmask 195752
  %700 = vst.msk [vmem:[%s7] sm:$0xff] %vm699, %v697
  // Predicated region
  $region30: #{rnn_bel_forward.1} parent=0 // pred_check
    _
  $region31: #{rnn_bel_forward.1} parent=0 // pred_check_branch
    %702 = sbr.rel (0) target = $region33
  $region32: #{rnn_bel_forward.1} parent=0 // pred_region
    _
  $region33: #{rnn_bel_forward.1} parent=0 // pred_fallthru
    _
  // Predicated region
  $region34: #{rnn_bel_forward.1} parent=0 // pred_check
    _
  $region35: #{rnn_bel_forward.1} parent=0 // pred_check_branch
    %704 = sbr.rel (0) target = $region37
  $region36: #{rnn_bel_forward.1} parent=0 // pred_region
    _
  $region37: #{rnn_bel_forward.1} parent=0 // pred_fallthru
    _
  // Predicated region
  $region38: #{rnn_bel_forward.1} parent=0 // pred_check
    _
  $region39: #{rnn_bel_forward.1} parent=0 // pred_check_branch
    %706 = sbr.rel (0) target = $region41
  $region40: #{rnn_bel_forward.1} parent=0 // pred_region
    _
  $region41: #{rnn_bel_forward.1} parent=0 // pred_fallthru
    _
  // Predicated region
  $region42: #{rnn_bel_forward.1} parent=0 // pred_check
    _
  $region43: #{rnn_bel_forward.1} parent=0 // pred_check_branch
    %708 = sbr.rel (0) target = $region45
  $region44: #{rnn_bel_forward.1} parent=0 // pred_region
    _
  $region45: #{rnn_bel_forward.1} parent=0 // pred_fallthru
    _

</llo_original>
